<compile_context>
chip_gen: v6e
topology: v6e:2x2x1
jax: 0.10.0
libtpu: 0.0.40
codegen_flags: <defaults>
</compile_context>

<pallas_src>
from functools import partial

import jax
import jax.numpy as jnp
from jax.experimental import pallas as pl
from jax.experimental.pallas import tpu as pltpu

NUM_BINS = 15


def _top_label_calibration_kernel(lo_ref, hi_ref, probas_ref, labels_ref,
                                  cnt_ref, conf_sum_ref, hit_sum_ref,
                                  *, n_total, k_steps):
    """Accumulate per-bin count / sum(top-conf) / sum(correct) for one sample tile.

    probas_ref: [C, tile_n] f32   (classes on sublanes, samples on lanes)
    labels_ref: [1, tile_n] int   (int8/int16/int32 all accepted)
    lo_ref/hi_ref: [num_bins, 1] f32 strict lower / upper bin edges
    cnt/conf_sum/hit_sum refs: [num_bins, 1] f32 resident accumulator outputs
    """
    p_idx = pl.program_id(0)
    k_idx = pl.program_id(1)

    @pl.when(k_idx == 0)
    def _init():
        cnt_ref[...] = jnp.zeros_like(cnt_ref)
        conf_sum_ref[...] = jnp.zeros_like(conf_sum_ref)
        hit_sum_ref[...] = jnp.zeros_like(hit_sum_ref)

    p = probas_ref[...]                                         # [C, T]
    y = labels_ref[...].astype(jnp.int32)                       # [1, T]
    c, t = p.shape

    # Validity mask for the ragged last tile / clamped phantom tile: global
    # sample index is computed from the UNclamped grid position, so a phantom
    # block (start >= n_total) contributes exactly zero.
    start = (p_idx * k_steps + k_idx) * t
    lane = jax.lax.broadcasted_iota(jnp.int32, (1, t), 1)
    valid = (lane + start) < n_total                            # [1, T] bool

    # Top-label confidence + predicted class (first argmax, like torch.max(-1)).
    conf = jnp.max(p, axis=0, keepdims=True)                    # [1, T]
    # Invalid columns -> -1.0: matches no bin and never injects NaN into the
    # masked-out products below (OOB block contents are unspecified).
    conf = jnp.where(valid, conf, jnp.float32(-1.0))
    cls_iota = jax.lax.broadcasted_iota(jnp.int32, p.shape, 0)
    pred = jnp.min(jnp.where(p == conf, cls_iota, jnp.int32(c)),
                   axis=0, keepdims=True)                       # [1, T]
    hit = (pred == y).astype(jnp.float32)                       # [1, T]

    # All bins at once via one broadcast strict compare against the bin-edge
    # columns (preserves the reference's open-interval boundary semantics).
    lo = lo_ref[...]                                            # [nb, 1]
    hi = hi_ref[...]                                            # [nb, 1]
    in_bin = ((conf > lo) & (conf < hi)).astype(jnp.float32)    # [nb, T]

    cnt_ref[...] += jnp.sum(in_bin, axis=1, keepdims=True)
    conf_sum_ref[...] += jnp.sum(in_bin * conf, axis=1, keepdims=True)
    hit_sum_ref[...] += jnp.sum(in_bin * hit, axis=1, keepdims=True)


def _vmem_budget():
    """Generation-aware (vmem_limit_bytes, double-buffered input budget)."""
    try:
        phys = int(pltpu.get_tpu_info().vmem_capacity_bytes)
    except Exception:
        phys = 0
    if phys >= 100 * 1024 * 1024:                 # v5e / v6e: 128 MiB physical
        return 64 * 1024 * 1024, 48 * 1024 * 1024
    # v7x-class (64 MiB per TensorCore) or unknown -> stay conservative.
    return 40 * 1024 * 1024, 32 * 1024 * 1024


def _pick_tile_n(n, c, input_budget):
    """Largest 128-multiple sample tile whose double-buffered inputs fit the budget."""
    c_sub = -(-c // 8) * 8                         # probas sublane padding
    lbl_sub = 8                                    # (1, T) label row pads to 8 sublanes
    bytes_per_col = 2 * 4 * (c_sub + lbl_sub)      # 2 buffers x 4 B x (probas + label)
    t = input_budget // bytes_per_col
    t = max(128, min(131072, (t // 128) * 128))
    t = min(t, max(128, -(-n // 128) * 128))       # don't over-pad tiny inputs
    return int(t)


def top_label_calibration_plot_cn(probas_cn, labels, num_bins=NUM_BINS,
                                  tile_n=None, num_cores=None):
    """Zero-copy entry point: probas_cn is class-major [C, N] (no transpose/pad).

    Returns {'confs': [num_bins], 'accs': [num_bins], 'n_samples': [num_bins]},
    with NaN for empty bins, matching TopLabelCalibrationPlot.forward.
    """
    probas_cn = jnp.asarray(probas_cn)
    if probas_cn.dtype != jnp.float32:
        probas_cn = probas_cn.astype(jnp.float32)
    labels = jnp.asarray(labels)
    # Keep narrow integer label dtypes through the DMA (bandwidth saving on v5e);
    # only widen non-integer / >32-bit dtypes.
    if (not jnp.issubdtype(labels.dtype, jnp.integer)) or labels.dtype.itemsize > 4:
        labels = labels.astype(jnp.int32)

    c, n = probas_cn.shape
    labels_row = labels.reshape(1, n)              # metadata-only reshape

    vmem_limit, input_budget = _vmem_budget()
    if tile_n is None:
        tile_n = _pick_tile_n(n, c, input_budget)
    assert tile_n % 128 == 0

    ntiles = -(-n // tile_n)
    if num_cores is None:
        # 1 on single-TensorCore v5e/v6e; pass num_cores=2 explicitly on dual-TC
        # chips.  TODO(synk): use CORE_PARALLEL / core_map once the target is known.
        try:
            num_cores = int(getattr(jax.devices()[0], "num_cores", 1))
        except Exception:
            num_cores = 1
    num_parallel = max(1, min(int(num_cores), 2, ntiles))
    k_steps = -(-ntiles // num_parallel)
    last_blk = ntiles - 1

    # Clamp the column-block index so a phantom trailing block (when
    # num_parallel * k_steps > ntiles) re-reads the last real block; the
    # in-kernel validity mask (computed from the unclamped position) zeroes it.
    def col_map(p_, k_):
        return (0, jnp.minimum(p_ * k_steps + k_, last_blk))

    # Bin edges as f32 constants, bit-identical to the reference's b / num_bins.
    bin_lo = jnp.asarray([b / num_bins for b in range(num_bins)],
                         dtype=jnp.float32).reshape(num_bins, 1)
    bin_hi = jnp.asarray([(b + 1) / num_bins for b in range(num_bins)],
                         dtype=jnp.float32).reshape(num_bins, 1)

    edge_spec = pl.BlockSpec((num_bins, 1), lambda p_, k_: (0, 0))
    out_spec = pl.BlockSpec((None, num_bins, 1), lambda p_, k_: (p_, 0, 0))
    out_sds = jax.ShapeDtypeStruct((num_parallel, num_bins, 1), jnp.float32)

    grid_spec = pltpu.PrefetchScalarGridSpec(
        num_scalar_prefetch=0,
        grid=(num_parallel, k_steps),
        in_specs=[
            edge_spec,
            edge_spec,
            pl.BlockSpec((c, tile_n), col_map),
            pl.BlockSpec((1, tile_n), col_map),
        ],
        out_specs=[out_spec, out_spec, out_spec],
    )

    kernel = partial(_top_label_calibration_kernel, n_total=n, k_steps=k_steps)

    cnt_p, conf_sum_p, hit_sum_p = pl.pallas_call(
        kernel,
        out_shape=(out_sds, out_sds, out_sds),
        grid_spec=grid_spec,
        compiler_params=pltpu.CompilerParams(
            dimension_semantics=("parallel", "arbitrary"),
            vmem_limit_bytes=vmem_limit,
        ),
    )(bin_lo, bin_hi, probas_cn, labels_row)

    # Tiny finalization on [num_bins] vectors: combine per-core partials, then
    # the 0/0 division reproduces the "empty bin -> NaN" branch.
    cnt = jnp.sum(cnt_p, axis=0)[:, 0]
    conf_sum = jnp.sum(conf_sum_p, axis=0)[:, 0]
    hit_sum = jnp.sum(hit_sum_p, axis=0)[:, 0]
    return {'confs': conf_sum / cnt, 'accs': hit_sum / cnt, 'n_samples': cnt}


def top_label_calibration_plot(probas, labels, num_bins=NUM_BINS,
                               tile_n=None, num_cores=None):
    """Module-compatible entry point: probas [N, C], labels [N].

    The [N, C] -> [C, N] transpose here is one extra HBM pass; producers that
    can emit class-major probabilities should call top_label_calibration_plot_cn
    directly and skip it.
    """
    probas = jnp.asarray(probas)
    if probas.dtype != jnp.float32:
        probas = probas.astype(jnp.float32)
    return top_label_calibration_plot_cn(probas.T, labels, num_bins=num_bins,
                                         tile_n=tile_n, num_cores=num_cores)


def _reference(probas, labels, num_bins=NUM_BINS):
    # Pure-JAX reference with the exact PyTorch loop semantics.
    conf = jnp.max(probas, axis=-1)
    pred = jnp.argmax(probas, axis=-1)
    hit = (pred == labels).astype(jnp.float32)
    confs, accs, ns = [], [], []
    for b in range(num_bins):
        lo, hi = b / num_bins, (b + 1) / num_bins
        in_bin = (conf > lo) & (conf < hi)
        m = in_bin.astype(jnp.float32)
        cnt = jnp.sum(m)
        confs.append(jnp.sum(conf * m) / cnt)   # 0/0 -> NaN for empty bins
        accs.append(jnp.sum(hit * m) / cnt)
        ns.append(cnt)
    return {'confs': jnp.stack(confs), 'accs': jnp.stack(accs),
            'n_samples': jnp.stack(ns)}


if __name__ == "__main__":
    import numpy as np

    def check(res, ref):
        jax.block_until_ready(res['confs'])
        jax.block_until_ready(res['accs'])
        jax.block_until_ready(res['n_samples'])
        np.testing.assert_allclose(np.asarray(res['confs']), np.asarray(ref['confs']),
                                   rtol=1e-5, atol=1e-6, equal_nan=True)
        np.testing.assert_allclose(np.asarray(res['accs']), np.asarray(ref['accs']),
                                   rtol=1e-5, atol=1e-6, equal_nan=True)
        np.testing.assert_allclose(np.asarray(res['n_samples']),
                                   np.asarray(ref['n_samples']), rtol=0, atol=0)

    key = jax.random.PRNGKey(0)

    # Case 1: module-native [N, C] entry, auto tile, auto core count.
    k1, k2, key = jax.random.split(key, 3)
    N, C = 1024, 4
    probas = jax.nn.softmax(jax.random.normal(k1, (N, C), jnp.float32), axis=-1)
    labels = jax.random.randint(k2, (N,), 0, C, dtype=jnp.int32)
    ref = _reference(probas, labels)
    check(top_label_calibration_plot(probas, labels), ref)

    # Case 2: zero-copy [C, N] entry, small forced tile -> multi-step
    # accumulation + explicit 2-way parallel slice.
    check(top_label_calibration_plot_cn(probas.T, labels, tile_n=128, num_cores=2), ref)

    # Case 3: ragged N (masked tail + clamped phantom block) and C not a
    # multiple of 8 (sublane-padding must not leak into max/argmax).
    k1, k2, key = jax.random.split(key, 3)
    N2, C2 = 777, 5
    probas2 = jax.nn.softmax(jax.random.normal(k1, (N2, C2), jnp.float32), axis=-1)
    labels2 = jax.random.randint(k2, (N2,), 0, C2, dtype=jnp.int32)
    ref2 = _reference(probas2, labels2)
    check(top_label_calibration_plot(probas2, labels2, tile_n=128, num_cores=2), ref2)

    # Case 4: more classes, auto tile, single partial last tile.
    k1, k2, key = jax.random.split(key, 3)
    N3, C3 = 384, 10
    probas3 = jax.nn.softmax(jax.random.normal(k1, (N3, C3), jnp.float32), axis=-1)
    labels3 = jax.random.randint(k2, (N3,), 0, C3, dtype=jnp.int32)
    ref3 = _reference(probas3, labels3)
    check(top_label_calibration_plot(probas3, labels3, tile_n=256), ref3)

    print("KERNEL_OK")
</pallas_src>

<mosaic_0001>
module attributes {stable_mosaic.version = 11 : i64} {
  func.func @_top_label_calibration_kernel(%arg0: i32, %arg1: i32, %arg2: memref<15x1xf32, #tpu.memory_space<vmem>>, %arg3: memref<15x1xf32, #tpu.memory_space<vmem>>, %arg4: memref<4x1024xf32, #tpu.memory_space<vmem>>, %arg5: memref<1x1024xi32, #tpu.memory_space<vmem>>, %arg6: memref<1x15x1xf32, #tpu.memory_space<vmem>>, %arg7: memref<1x15x1xf32, #tpu.memory_space<vmem>>, %arg8: memref<1x15x1xf32, #tpu.memory_space<vmem>>) attributes {dimension_semantics = [#tpu.dimension_semantics<parallel>, #tpu.dimension_semantics<arbitrary>], iteration_bounds = array<i64: 1, 1>, scalar_prefetch = 0 : i64, scratch_operands = 0 : i64, tpu.core_type = #tpu.core_type<tc>, window_params = [{pipeline_mode = #tpu.pipeline_mode<synchronous>, transform_indices = @transform_0, window_bounds = array<i64: 15, 1>}, {pipeline_mode = #tpu.pipeline_mode<synchronous>, transform_indices = @transform_1, window_bounds = array<i64: 15, 1>}, {transform_indices = @transform_2, window_bounds = array<i64: 4, 1024>}, {transform_indices = @transform_3, window_bounds = array<i64: 1, 1024>}, {transform_indices = @transform_4, window_bounds = array<i64: 1, 15, 1>}, {transform_indices = @transform_5, window_bounds = array<i64: 1, 15, 1>}, {transform_indices = @transform_6, window_bounds = array<i64: 1, 15, 1>}]} {
    %c0_i32 = arith.constant 0 : i32
    %0 = arith.cmpi eq, %arg1, %c0_i32 : i32
    %1 = arith.extui %0 : i1 to i32
    %c0_i32_0 = arith.constant 0 : i32
    %2 = arith.cmpi ne, %1, %c0_i32_0 : i32
    scf.if %2 {
      %cst_32 = arith.constant 0.000000e+00 : f32
      %66 = vector.broadcast %cst_32 : f32 to vector<15x1xf32>
      %c0_33 = arith.constant 0 : index
      %c0_34 = arith.constant 0 : index
      %c0_35 = arith.constant 0 : index
      %67 = vector.load %arg6[%c0_33, %c0_34, %c0_35] : memref<1x15x1xf32, #tpu.memory_space<vmem>>, vector<1x15x1xf32>
      %68 = vector.shape_cast %67 : vector<1x15x1xf32> to vector<15x1xf32>
      %69 = vector.shape_cast %66 : vector<15x1xf32> to vector<1x15x1xf32>
      tpu.vector_store %arg6[%c0_33, %c0_34, %c0_35], %69 {strides = array<i32>} : memref<1x15x1xf32, #tpu.memory_space<vmem>>, vector<1x15x1xf32>,
      %cst_36 = arith.constant 0.000000e+00 : f32
      %70 = vector.broadcast %cst_36 : f32 to vector<15x1xf32>
      %c0_37 = arith.constant 0 : index
      %c0_38 = arith.constant 0 : index
      %c0_39 = arith.constant 0 : index
      %71 = vector.load %arg7[%c0_37, %c0_38, %c0_39] : memref<1x15x1xf32, #tpu.memory_space<vmem>>, vector<1x15x1xf32>
      %72 = vector.shape_cast %71 : vector<1x15x1xf32> to vector<15x1xf32>
      %73 = vector.shape_cast %70 : vector<15x1xf32> to vector<1x15x1xf32>
      tpu.vector_store %arg7[%c0_37, %c0_38, %c0_39], %73 {strides = array<i32>} : memref<1x15x1xf32, #tpu.memory_space<vmem>>, vector<1x15x1xf32>,
      %cst_40 = arith.constant 0.000000e+00 : f32
      %74 = vector.broadcast %cst_40 : f32 to vector<15x1xf32>
      %c0_41 = arith.constant 0 : index
      %c0_42 = arith.constant 0 : index
      %c0_43 = arith.constant 0 : index
      %75 = vector.load %arg8[%c0_41, %c0_42, %c0_43] : memref<1x15x1xf32, #tpu.memory_space<vmem>>, vector<1x15x1xf32>
      %76 = vector.shape_cast %75 : vector<1x15x1xf32> to vector<15x1xf32>
      %77 = vector.shape_cast %74 : vector<15x1xf32> to vector<1x15x1xf32>
      tpu.vector_store %arg8[%c0_41, %c0_42, %c0_43], %77 {strides = array<i32>} : memref<1x15x1xf32, #tpu.memory_space<vmem>>, vector<1x15x1xf32>,
    } else {
    }
    %c0 = arith.constant 0 : index
    %c0_1 = arith.constant 0 : index
    %3 = vector.load %arg4[%c0, %c0_1] : memref<4x1024xf32, #tpu.memory_space<vmem>>, vector<4x1024xf32>
    %c0_2 = arith.constant 0 : index
    %c0_3 = arith.constant 0 : index
    %4 = vector.load %arg5[%c0_2, %c0_3] : memref<1x1024xi32, #tpu.memory_space<vmem>>, vector<1x1024xi32>
    %c1_i32 = arith.constant 1 : i32
    %5 = arith.muli %arg0, %c1_i32 : i32
    %6 = arith.addi %5, %arg1 : i32
    %c1024_i32 = arith.constant 1024 : i32
    %7 = arith.muli %6, %c1024_i32 : i32
    %8 = tpu.iota {dimensions = array<i32: 1>} : vector<1x1024xi32>
    %9 = vector.broadcast %7 : i32 to vector<1x1024xi32>
    %10 = arith.addi %8, %9 : vector<1x1024xi32>
    %c1024_i32_4 = arith.constant 1024 : i32
    %11 = vector.broadcast %c1024_i32_4 : i32 to vector<1x1024xi32>
    %12 = arith.cmpi slt, %10, %11 : vector<1x1024xi32>
    %cst = arith.constant dense<0xFF800000> : vector<1024xf32>
    %13 = vector.multi_reduction <maximumf>, %3, %cst [0] : vector<4x1024xf32> to vector<1024xf32>
    %14 = vector.shape_cast %13 : vector<1024xf32> to vector<1x1024xf32>
    %cst_5 = arith.constant -1.000000e+00 : f32
    %15 = vector.broadcast %cst_5 : f32 to vector<1x1024xf32>
    %16 = arith.select %12, %14, %15 : vector<1x1024xi1>, vector<1x1024xf32>
    %17 = tpu.iota {dimensions = array<i32: 0>} : vector<4x1024xi32>
    %18 = vector.broadcast %16 : vector<1x1024xf32> to vector<4x1024xf32>
    %19 = arith.cmpf oeq, %3, %18 : vector<4x1024xf32>
    %c4_i32 = arith.constant 4 : i32
    %20 = vector.broadcast %c4_i32 : i32 to vector<4x1024xi32>
    %21 = arith.select %19, %17, %20 : vector<4x1024xi1>, vector<4x1024xi32>
    %cst_6 = arith.constant dense<2147483647> : vector<1024xi32>
    %22 = vector.multi_reduction <minsi>, %21, %cst_6 [0] : vector<4x1024xi32> to vector<1024xi32>
    %23 = vector.shape_cast %22 : vector<1024xi32> to vector<1x1024xi32>
    %24 = arith.cmpi eq, %23, %4 : vector<1x1024xi32>
    %25 = arith.extui %24 : vector<1x1024xi1> to vector<1x1024xi32>
    %26 = arith.sitofp %25 : vector<1x1024xi32> to vector<1x1024xf32>
    %c0_7 = arith.constant 0 : index
    %c0_8 = arith.constant 0 : index
    %27 = vector.load %arg2[%c0_7, %c0_8] : memref<15x1xf32, #tpu.memory_space<vmem>>, vector<15x1xf32>
    %c0_9 = arith.constant 0 : index
    %c0_10 = arith.constant 0 : index
    %28 = vector.load %arg3[%c0_9, %c0_10] : memref<15x1xf32, #tpu.memory_space<vmem>>, vector<15x1xf32>
    %29 = vector.broadcast %16 : vector<1x1024xf32> to vector<15x1024xf32>
    %30 = vector.broadcast %27 : vector<15x1xf32> to vector<15x1024xf32>
    %31 = arith.cmpf ogt, %29, %30 : vector<15x1024xf32>
    %32 = vector.broadcast %16 : vector<1x1024xf32> to vector<15x1024xf32>
    %33 = vector.broadcast %28 : vector<15x1xf32> to vector<15x1024xf32>
    %34 = arith.cmpf olt, %32, %33 : vector<15x1024xf32>
    %35 = arith.andi %31, %34 : vector<15x1024xi1>
    %36 = arith.extui %35 : vector<15x1024xi1> to vector<15x1024xi32>
    %37 = arith.sitofp %36 : vector<15x1024xi32> to vector<15x1024xf32>
    %c0_11 = arith.constant 0 : index
    %c0_12 = arith.constant 0 : index
    %c0_13 = arith.constant 0 : index
    %38 = vector.load %arg6[%c0_11, %c0_12, %c0_13] : memref<1x15x1xf32, #tpu.memory_space<vmem>>, vector<1x15x1xf32>
    %39 = vector.shape_cast %38 : vector<1x15x1xf32> to vector<15x1xf32>
    %cst_14 = arith.constant dense<0.000000e+00> : vector<15xf32>
    %40 = vector.multi_reduction <add>, %37, %cst_14 [1] : vector<15x1024xf32> to vector<15xf32>
    %41 = vector.shape_cast %40 : vector<15xf32> to vector<15x1xf32>
    %42 = arith.addf %39, %41 : vector<15x1xf32>
    %c0_15 = arith.constant 0 : index
    %c0_16 = arith.constant 0 : index
    %c0_17 = arith.constant 0 : index
    %43 = vector.load %arg6[%c0_15, %c0_16, %c0_17] : memref<1x15x1xf32, #tpu.memory_space<vmem>>, vector<1x15x1xf32>
    %44 = vector.shape_cast %43 : vector<1x15x1xf32> to vector<15x1xf32>
    %45 = vector.shape_cast %42 : vector<15x1xf32> to vector<1x15x1xf32>
    tpu.vector_store %arg6[%c0_15, %c0_16, %c0_17], %45 {strides = array<i32>} : memref<1x15x1xf32, #tpu.memory_space<vmem>>, vector<1x15x1xf32>,
    %c0_18 = arith.constant 0 : index
    %c0_19 = arith.constant 0 : index
    %c0_20 = arith.constant 0 : index
    %46 = vector.load %arg7[%c0_18, %c0_19, %c0_20] : memref<1x15x1xf32, #tpu.memory_space<vmem>>, vector<1x15x1xf32>
    %47 = vector.shape_cast %46 : vector<1x15x1xf32> to vector<15x1xf32>
    %48 = vector.broadcast %16 : vector<1x1024xf32> to vector<15x1024xf32>
    %49 = arith.mulf %37, %48 : vector<15x1024xf32>
    %cst_21 = arith.constant dense<0.000000e+00> : vector<15xf32>
    %50 = vector.multi_reduction <add>, %49, %cst_21 [1] : vector<15x1024xf32> to vector<15xf32>
    %51 = vector.shape_cast %50 : vector<15xf32> to vector<15x1xf32>
    %52 = arith.addf %47, %51 : vector<15x1xf32>
    %c0_22 = arith.constant 0 : index
    %c0_23 = arith.constant 0 : index
    %c0_24 = arith.constant 0 : index
    %53 = vector.load %arg7[%c0_22, %c0_23, %c0_24] : memref<1x15x1xf32, #tpu.memory_space<vmem>>, vector<1x15x1xf32>
    %54 = vector.shape_cast %53 : vector<1x15x1xf32> to vector<15x1xf32>
    %55 = vector.shape_cast %52 : vector<15x1xf32> to vector<1x15x1xf32>
    tpu.vector_store %arg7[%c0_22, %c0_23, %c0_24], %55 {strides = array<i32>} : memref<1x15x1xf32, #tpu.memory_space<vmem>>, vector<1x15x1xf32>,
    %c0_25 = arith.constant 0 : index
    %c0_26 = arith.constant 0 : index
    %c0_27 = arith.constant 0 : index
    %56 = vector.load %arg8[%c0_25, %c0_26, %c0_27] : memref<1x15x1xf32, #tpu.memory_space<vmem>>, vector<1x15x1xf32>
    %57 = vector.shape_cast %56 : vector<1x15x1xf32> to vector<15x1xf32>
    %58 = vector.broadcast %26 : vector<1x1024xf32> to vector<15x1024xf32>
    %59 = arith.mulf %37, %58 : vector<15x1024xf32>
    %cst_28 = arith.constant dense<0.000000e+00> : vector<15xf32>
    %60 = vector.multi_reduction <add>, %59, %cst_28 [1] : vector<15x1024xf32> to vector<15xf32>
    %61 = vector.shape_cast %60 : vector<15xf32> to vector<15x1xf32>
    %62 = arith.addf %57, %61 : vector<15x1xf32>
    %c0_29 = arith.constant 0 : index
    %c0_30 = arith.constant 0 : index
    %c0_31 = arith.constant 0 : index
    %63 = vector.load %arg8[%c0_29, %c0_30, %c0_31] : memref<1x15x1xf32, #tpu.memory_space<vmem>>, vector<1x15x1xf32>
    %64 = vector.shape_cast %63 : vector<1x15x1xf32> to vector<15x1xf32>
    %65 = vector.shape_cast %62 : vector<15x1xf32> to vector<1x15x1xf32>
    tpu.vector_store %arg8[%c0_29, %c0_30, %c0_31], %65 {strides = array<i32>} : memref<1x15x1xf32, #tpu.memory_space<vmem>>, vector<1x15x1xf32>,
    return
  }
  func.func @transform_0(%arg0: i32, %arg1: i32) -> (i32, i32) {
    %c0_i32 = arith.constant 0 : i32
    %c0_i32_0 = arith.constant 0 : i32
    %c0_i32_1 = arith.constant 0 : i32
    return %c0_i32, %c0_i32_0 : i32, i32
  }
  func.func @transform_1(%arg0: i32, %arg1: i32) -> (i32, i32) {
    %c0_i32 = arith.constant 0 : i32
    %c0_i32_0 = arith.constant 0 : i32
    %c0_i32_1 = arith.constant 0 : i32
    return %c0_i32, %c0_i32_0 : i32, i32
  }
  func.func @transform_2(%arg0: i32, %arg1: i32) -> (i32, i32) {
    %c1_i32 = arith.constant 1 : i32
    %0 = arith.muli %arg0, %c1_i32 : i32
    %1 = arith.addi %0, %arg1 : i32
    %c0_i32 = arith.constant 0 : i32
    %2 = arith.minsi %1, %c0_i32 : i32
    %c0_i32_0 = arith.constant 0 : i32
    %c0_i32_1 = arith.constant 0 : i32
    return %c0_i32_0, %2 : i32, i32
  }
  func.func @transform_3(%arg0: i32, %arg1: i32) -> (i32, i32) {
    %c1_i32 = arith.constant 1 : i32
    %0 = arith.muli %arg0, %c1_i32 : i32
    %1 = arith.addi %0, %arg1 : i32
    %c0_i32 = arith.constant 0 : i32
    %2 = arith.minsi %1, %c0_i32 : i32
    %c0_i32_0 = arith.constant 0 : i32
    %c0_i32_1 = arith.constant 0 : i32
    return %c0_i32_0, %2 : i32, i32
  }
  func.func @transform_4(%arg0: i32, %arg1: i32) -> (i32, i32, i32) {
    %c0_i32 = arith.constant 0 : i32
    %c0_i32_0 = arith.constant 0 : i32
    %c0_i32_1 = arith.constant 0 : i32
    return %arg0, %c0_i32, %c0_i32_0 : i32, i32, i32
  }
  func.func @transform_5(%arg0: i32, %arg1: i32) -> (i32, i32, i32) {
    %c0_i32 = arith.constant 0 : i32
    %c0_i32_0 = arith.constant 0 : i32
    %c0_i32_1 = arith.constant 0 : i32
    return %arg0, %c0_i32, %c0_i32_0 : i32, i32, i32
  }
  func.func @transform_6(%arg0: i32, %arg1: i32) -> (i32, i32, i32) {
    %c0_i32 = arith.constant 0 : i32
    %c0_i32_0 = arith.constant 0 : i32
    %c0_i32_1 = arith.constant 0 : i32
    return %arg0, %c0_i32, %c0_i32_0 : i32, i32, i32
  }
}

</mosaic_0001>

<llo_original>
// kernel: tpu_custom_call.1
$region0: #{tpu_custom_call.1}
  #allocation0 [shape = 'u32[]', space=smem, size = 0x4, offset = 0x4, fixed_abs, tag = 'smem constant byte address 0x4 - core index']
  #allocation1 [shape = 'u32[144,128]{1,0:T(1,128)}', space=vmem, size = 0x12000, scoped, tag = 'internal scratch']
  %s0 = inlined_call_operand.vmem [shape: f32[15,1], index: 0, kind: input, shape index: {}]
  %s1 = inlined_call_operand.vmem [shape: f32[15,1], index: 1, kind: input, shape index: {}]
  %s2 = inlined_call_operand.vmem [shape: f32[4,1024], index: 2, kind: input, shape index: {}]
  %s3 = inlined_call_operand.hbm [shape: s32[1,1024], index: 3, kind: input, shape index: {}]
  %s4 = inlined_call_operand.vmem [shape: f32[1,15,1], index: 4, kind: output, shape index: {0}]
  %s5 = inlined_call_operand.vmem [shape: f32[1,15,1], index: 5, kind: output, shape index: {1}]
  %s6 = inlined_call_operand.vmem [shape: f32[1,15,1], index: 6, kind: output, shape index: {2}]
  %7 = xla_tuple %s4, %s5, %s6
  %s8 = sld [smem:[#allocation0]]
  $region50: #{tpu_custom_call.1} parent=0
    _
  %s10 = ssub.s32 1, %s8
  %s11 = scalar_select 0, %s10, %s8
  $region1: #{tpu_custom_call.1} parent=0
    #allocation2 [shape = 'u8[4096]{0}', space=vmem, size = 0x1000, scoped, tag = 'input window, operand 3, single buffered']
    #allocation3 [shape = 's32[1]{0}', space=sflag, size = 0x4, scoped, tag = 'scoped memory for tpu_custom_call.1']
    %12 = vsyncpa [#allocation3], 0
    // Predicated region
    $region2: #{tpu_custom_call.1} parent=1 // pred_check
      _
    $region3: #{tpu_custom_call.1} parent=1 // pred_check_branch
      %14 = sbr.rel (0) target = $region5
    $region4: #{tpu_custom_call.1} parent=1 // pred_region
      _
    $region5: #{tpu_custom_call.1} parent=1 // pred_fallthru
      _
    // Predicated region
    $region6: #{tpu_custom_call.1} parent=1 // pred_check
      _
    $region7: #{tpu_custom_call.1} parent=1 // pred_check_branch
      %16 = sbr.rel (0) target = $region9
    $region8: #{tpu_custom_call.1} parent=1 // pred_region
      _
    $region9: #{tpu_custom_call.1} parent=1 // pred_fallthru
      _
    // Predicated region
    $region10: #{tpu_custom_call.1} parent=1 // pred_check
      _
    $region11: #{tpu_custom_call.1} parent=1 // pred_check_branch
      %18 = sbr.rel (0) target = $region13
    $region12: #{tpu_custom_call.1} parent=1 // pred_region
      %s19 = sadd.s32 0, 0
      %p20 = scmp.lt.s32.totalorder %s19, 0
      %s21 = scalar_select %p20, %s19, 0
      %s22 = smul.u32 8, %s21
      %p23 = scmp.lt.s32.totalorder %s22, 7
      %s24 = scalar_select %p23, %s22, 7
      %s25 = smul.addr %s24, 4
      %s26 = scalar_lea.vmem %s2, %s25
      %s27 = sadd.s32 0, 0
      %p28 = scmp.lt.s32.totalorder %s27, 0
      %s29 = scalar_select %p28, %s27, 0
      %s30 = smul.u32 8, %s29
    $region13: #{tpu_custom_call.1} parent=1 // pred_fallthru
      _
    // Predicated region
    $region14: #{tpu_custom_call.1} parent=1 // pred_check
      _
    $region15: #{tpu_custom_call.1} parent=1 // pred_check_branch
      %32 = sbr.rel (0) target = $region17
    $region16: #{tpu_custom_call.1} parent=1 // pred_region
      %s33 = sadd.s32 0, 0
      %p34 = scmp.lt.s32.totalorder %s33, 0
      %s35 = scalar_select %p34, %s33, 0
      %s36 = smul.u32 8, %s35
      %s38 = ssub.s32 128, 128
      %39 = vsyncadd [#allocation3], %s38
      %s40 = smul.addr %s36, 16
      %s41 = scalar_lea.hbm %s3, %s40
      %s43 = sshll.u32 [#allocation2], 4
      %s44 = int_to_ptr.vmem [resolvable:$true] %s43
      %46 = dma.hbm_to_vmem [thread:$0]  %s41, 128, %s44, [#allocation3]
    $region17: #{tpu_custom_call.1} parent=1 // pred_fallthru
      _
    // Predicated region
    $region18: #{tpu_custom_call.1} parent=1 // pred_check
      _
    $region19: #{tpu_custom_call.1} parent=1 // pred_check_branch
      %48 = sbr.rel (0) target = $region21
    $region20: #{tpu_custom_call.1} parent=1 // pred_region
      %49 = dma.done [#allocation3], 128
    $region21: #{tpu_custom_call.1} parent=1 // pred_fallthru
      _
    %s50 = sadd.s32 0, 0
    %p51 = scmp.lt.s32.totalorder %s50, 0
    %s52 = scalar_select %p51, %s50, 0
    %s53 = smul.u32 8, %s52
    %p54 = scmp.lt.s32.totalorder %s53, 7
    %s55 = scalar_select %p54, %s53, 7
    %s56 = smul.addr %s55, 4
    %s57 = scalar_lea.vmem %s2, %s56
    %s58 = sadd.s32 0, 0
    %p59 = scmp.lt.s32.totalorder %s58, 0
    %s60 = scalar_select %p59, %s58, 0
    %s61 = smul.u32 8, %s60
    %p62 = scmp.lt.s32.totalorder %s61, 7
    %s63 = scalar_select %p62, %s61, 7
    %s64 = smul.addr %s63, 4
    %s65 = scalar_lea.vmem %s2, %s64
    %s66 = sadd.s32 0, 0
    %p67 = scmp.lt.s32.totalorder %s66, 0
    %s68 = scalar_select %p67, %s66, 0
    %s69 = smul.u32 8, %s68
    %s70 = sadd.s32 0, 0
    %p71 = scmp.lt.s32.totalorder %s70, 0
    %s72 = scalar_select %p71, %s70, 0
    %s73 = smul.u32 8, %s72
    %p74 = scmp.eq.s32.totalorder 0, 0
    // Predicated region
    $region22: #{tpu_custom_call.1} parent=1 // pred_check
      %p75 = pneg %p74
    $region23: #{tpu_custom_call.1} parent=1 // pred_check_branch
      %77 = sbr.rel (%p75) target = $region25
    $region24: #{tpu_custom_call.1} parent=1 // pred_region
      %vm78 = vcmask 7168
      %79 = vst.msk [vmem:[%s4] sm:$0xff] %vm78, 0.0
      %vm80 = vcmask 6144
      %81 = vst.msk [vmem:[%s4 + $0x8] sm:$0x7f] %vm80, 0.0
      %82 = vst.msk [vmem:[%s5] sm:$0xff] %vm78, 0.0
      %83 = vst.msk [vmem:[%s5 + $0x8] sm:$0x7f] %vm80, 0.0
      %84 = vst.msk [vmem:[%s6] sm:$0xff] %vm78, 0.0
      %85 = vst.msk [vmem:[%s6 + $0x8] sm:$0x7f] %vm80, 0.0
    $region25: #{tpu_custom_call.1} parent=1 // pred_fallthru
      _
    %v86 = vld [vmem:[%s65] sm:$0xff]
    %v87 = vld [vmem:[%s65 + $0x8] sm:$0xff]
    %v88 = vld [vmem:[%s65 + $0x10] sm:$0xff]
    %v89 = vld [vmem:[%s65 + $0x18] sm:$0xff]
    %v90 = vld [vmem:[#allocation2] sm:$0xff]
    %s91 = sadd.s32 0, 0
    %s92 = smul.u32 %s91, 1024
    %v93 = vlaneseq
    %v94 = vand.u32 %v93, 127
    %v95 = vadd.s32 %v94, 128
    %v96 = vadd.s32 %v94, 256
    %v97 = vadd.s32 %v94, 384
    %v98 = vadd.s32 %v94, 512
    %v99 = vadd.s32 %v94, 640
    %v100 = vadd.s32 %v94, 768
    %v101 = vadd.s32 %v94, 896
    %v102 = vstv %s92
    %v103 = vadd.s32 %v94, %v102
    %v104 = vadd.s32 %v95, %v102
    %v105 = vadd.s32 %v96, %v102
    %v106 = vadd.s32 %v97, %v102
    %v107 = vadd.s32 %v98, %v102
    %v108 = vadd.s32 %v99, %v102
    %v109 = vadd.s32 %v100, %v102
    %v110 = vadd.s32 %v101, %v102
    %vm111 = vcmp.lt.s32.totalorder %v103, 1024
    %vm112 = vcmp.lt.s32.totalorder %v104, 1024
    %vm113 = vcmp.lt.s32.totalorder %v105, 1024
    %vm114 = vcmp.lt.s32.totalorder %v106, 1024
    %vm115 = vcmp.lt.s32.totalorder %v107, 1024
    %vm116 = vcmp.lt.s32.totalorder %v108, 1024
    %vm117 = vcmp.lt.s32.totalorder %v109, 1024
    %vm118 = vcmp.lt.s32.totalorder %v110, 1024
    %v123 = vcombine.high %v86, %v86
    %v124 = vcombine.high %v87, %v87
    %v125 = vcombine.high %v88, %v88
    %v126 = vcombine.high %v89, %v89
    %vm131 = vcmask 1043456
    %v132 = vsel %vm131, %v86, -inf
    %v133 = vrot.slane %v132, 4
    %v134 = vmax.f32 %v132, %v133
    %v135 = vrot.slane %v134, 2
    %v136 = vmax.f32 %v134, %v135
    %v137 = vrot.slane %v136, 1
    %v138 = vmax.f32 %v136, %v137
    %v139 = vsel %vm131, %v123, -inf
    %v140 = vrot.slane %v139, 4
    %v141 = vmax.f32 %v139, %v140
    %v142 = vrot.slane %v141, 2
    %v143 = vmax.f32 %v141, %v142
    %v144 = vrot.slane %v143, 1
    %v145 = vmax.f32 %v143, %v144
    %v146 = vsel %vm131, %v87, -inf
    %v147 = vrot.slane %v146, 4
    %v148 = vmax.f32 %v146, %v147
    %v149 = vrot.slane %v148, 2
    %v150 = vmax.f32 %v148, %v149
    %v151 = vrot.slane %v150, 1
    %v152 = vmax.f32 %v150, %v151
    %v153 = vsel %vm131, %v124, -inf
    %v154 = vrot.slane %v153, 4
    %v155 = vmax.f32 %v153, %v154
    %v156 = vrot.slane %v155, 2
    %v157 = vmax.f32 %v155, %v156
    %v158 = vrot.slane %v157, 1
    %v159 = vmax.f32 %v157, %v158
    %v160 = vsel %vm131, %v88, -inf
    %v161 = vrot.slane %v160, 4
    %v162 = vmax.f32 %v160, %v161
    %v163 = vrot.slane %v162, 2
    %v164 = vmax.f32 %v162, %v163
    %v165 = vrot.slane %v164, 1
    %v166 = vmax.f32 %v164, %v165
    %v167 = vsel %vm131, %v125, -inf
    %v168 = vrot.slane %v167, 4
    %v169 = vmax.f32 %v167, %v168
    %v170 = vrot.slane %v169, 2
    %v171 = vmax.f32 %v169, %v170
    %v172 = vrot.slane %v171, 1
    %v173 = vmax.f32 %v171, %v172
    %v174 = vsel %vm131, %v89, -inf
    %v175 = vrot.slane %v174, 4
    %v176 = vmax.f32 %v174, %v175
    %v177 = vrot.slane %v176, 2
    %v178 = vmax.f32 %v176, %v177
    %v179 = vrot.slane %v178, 1
    %v180 = vmax.f32 %v178, %v179
    %v181 = vsel %vm131, %v126, -inf
    %v182 = vrot.slane %v181, 4
    %v183 = vmax.f32 %v181, %v182
    %v184 = vrot.slane %v183, 2
    %v185 = vmax.f32 %v183, %v184
    %v186 = vrot.slane %v185, 1
    %v187 = vmax.f32 %v185, %v186
    %v188 = vsel %vm111, %v138, -1.0
    %v189 = vsel %vm112, %v145, -1.0
    %v190 = vsel %vm113, %v152, -1.0
    %v191 = vsel %vm114, %v159, -1.0
    %v192 = vsel %vm115, %v166, -1.0
    %v193 = vsel %vm116, %v173, -1.0
    %v194 = vsel %vm117, %v180, -1.0
    %v195 = vsel %vm118, %v187, -1.0
    %v196 = vlaneseq
    %v197 = vshrl.u32 %v196, 7
    %v206 = vcombine.low %v188, %v189
    %v207 = vcombine.low %v190, %v191
    %v208 = vcombine.low %v192, %v193
    %v209 = vcombine.low %v194, %v195
    %vm214 = vcmp.eq.f32.partialorder %v86, %v206
    %vm215 = vcmp.eq.f32.partialorder %v87, %v207
    %vm216 = vcmp.eq.f32.partialorder %v88, %v208
    %vm217 = vcmp.eq.f32.partialorder %v89, %v209
    %v219 = vunpack.c.l.s4 839922192
    %v220 = vunpack.c.0.s8 %v219
    %v221 = vlaneseq
    %v222 = vshrl.u32 %v221, 7
    %v223 = vsub.s32 %v220, %v222
    %v224 = vrot.slane %v197, %v223
    %v225 = vsel %vm214, %v224, 4
    %v226 = vsel %vm215, %v224, 4
    %v227 = vsel %vm216, %v224, 4
    %v228 = vsel %vm217, %v224, 4
    %v229 = vcombine.high %v225, %v225
    %v230 = vcombine.high %v226, %v226
    %v231 = vcombine.high %v227, %v227
    %v232 = vcombine.high %v228, %v228
    %v233 = vsel %vm131, %v225, 2147483647
    %v234 = vrot.slane %v233, 4
    %vm235 = vcmp.lt.s32.totalorder %v233, %v234
    %v236 = vsel %vm235, %v233, %v234
    %v237 = vrot.slane %v236, 2
    %vm238 = vcmp.lt.s32.totalorder %v236, %v237
    %v239 = vsel %vm238, %v236, %v237
    %v240 = vrot.slane %v239, 1
    %vm241 = vcmp.lt.s32.totalorder %v239, %v240
    %v242 = vsel %vm241, %v239, %v240
    %v243 = vsel %vm131, %v229, 2147483647
    %v244 = vrot.slane %v243, 4
    %vm245 = vcmp.lt.s32.totalorder %v243, %v244
    %v246 = vsel %vm245, %v243, %v244
    %v247 = vrot.slane %v246, 2
    %vm248 = vcmp.lt.s32.totalorder %v246, %v247
    %v249 = vsel %vm248, %v246, %v247
    %v250 = vrot.slane %v249, 1
    %vm251 = vcmp.lt.s32.totalorder %v249, %v250
    %v252 = vsel %vm251, %v249, %v250
    %v253 = vsel %vm131, %v226, 2147483647
    %v254 = vrot.slane %v253, 4
    %vm255 = vcmp.lt.s32.totalorder %v253, %v254
    %v256 = vsel %vm255, %v253, %v254
    %v257 = vrot.slane %v256, 2
    %vm258 = vcmp.lt.s32.totalorder %v256, %v257
    %v259 = vsel %vm258, %v256, %v257
    %v260 = vrot.slane %v259, 1
    %vm261 = vcmp.lt.s32.totalorder %v259, %v260
    %v262 = vsel %vm261, %v259, %v260
    %v263 = vsel %vm131, %v230, 2147483647
    %v264 = vrot.slane %v263, 4
    %vm265 = vcmp.lt.s32.totalorder %v263, %v264
    %v266 = vsel %vm265, %v263, %v264
    %v267 = vrot.slane %v266, 2
    %vm268 = vcmp.lt.s32.totalorder %v266, %v267
    %v269 = vsel %vm268, %v266, %v267
    %v270 = vrot.slane %v269, 1
    %vm271 = vcmp.lt.s32.totalorder %v269, %v270
    %v272 = vsel %vm271, %v269, %v270
    %v273 = vsel %vm131, %v227, 2147483647
    %v274 = vrot.slane %v273, 4
    %vm275 = vcmp.lt.s32.totalorder %v273, %v274
    %v276 = vsel %vm275, %v273, %v274
    %v277 = vrot.slane %v276, 2
    %vm278 = vcmp.lt.s32.totalorder %v276, %v277
    %v279 = vsel %vm278, %v276, %v277
    %v280 = vrot.slane %v279, 1
    %vm281 = vcmp.lt.s32.totalorder %v279, %v280
    %v282 = vsel %vm281, %v279, %v280
    %v283 = vsel %vm131, %v231, 2147483647
    %v284 = vrot.slane %v283, 4
    %vm285 = vcmp.lt.s32.totalorder %v283, %v284
    %v286 = vsel %vm285, %v283, %v284
    %v287 = vrot.slane %v286, 2
    %vm288 = vcmp.lt.s32.totalorder %v286, %v287
    %v289 = vsel %vm288, %v286, %v287
    %v290 = vrot.slane %v289, 1
    %vm291 = vcmp.lt.s32.totalorder %v289, %v290
    %v292 = vsel %vm291, %v289, %v290
    %v293 = vsel %vm131, %v228, 2147483647
    %v294 = vrot.slane %v293, 4
    %vm295 = vcmp.lt.s32.totalorder %v293, %v294
    %v296 = vsel %vm295, %v293, %v294
    %v297 = vrot.slane %v296, 2
    %vm298 = vcmp.lt.s32.totalorder %v296, %v297
    %v299 = vsel %vm298, %v296, %v297
    %v300 = vrot.slane %v299, 1
    %vm301 = vcmp.lt.s32.totalorder %v299, %v300
    %v302 = vsel %vm301, %v299, %v300
    %v303 = vsel %vm131, %v232, 2147483647
    %v304 = vrot.slane %v303, 4
    %vm305 = vcmp.lt.s32.totalorder %v303, %v304
    %v306 = vsel %vm305, %v303, %v304
    %v307 = vrot.slane %v306, 2
    %vm308 = vcmp.lt.s32.totalorder %v306, %v307
    %v309 = vsel %vm308, %v306, %v307
    %v310 = vrot.slane %v309, 1
    %vm311 = vcmp.lt.s32.totalorder %v309, %v310
    %v312 = vsel %vm311, %v309, %v310
    %v313 = vlaneseq
    %v314 = vshrl.u32 %v313, 7
    %v315 = vsub.s32 0, %v314
    %v316 = vrot.slane %v90, %v315
    %v317 = vlaneseq
    %v318 = vshrl.u32 %v317, 7
    %v319 = vsub.s32 1, %v318
    %v320 = vrot.slane %v90, %v319
    %v321 = vlaneseq
    %v322 = vshrl.u32 %v321, 7
    %v323 = vsub.s32 2, %v322
    %v324 = vrot.slane %v90, %v323
    %v325 = vlaneseq
    %v326 = vshrl.u32 %v325, 7
    %v327 = vsub.s32 3, %v326
    %v328 = vrot.slane %v90, %v327
    %v329 = vlaneseq
    %v330 = vshrl.u32 %v329, 7
    %v331 = vsub.s32 4, %v330
    %v332 = vrot.slane %v90, %v331
    %v333 = vlaneseq
    %v334 = vshrl.u32 %v333, 7
    %v335 = vsub.s32 5, %v334
    %v336 = vrot.slane %v90, %v335
    %v337 = vlaneseq
    %v338 = vshrl.u32 %v337, 7
    %v339 = vsub.s32 6, %v338
    %v340 = vrot.slane %v90, %v339
    %v341 = vlaneseq
    %v342 = vshrl.u32 %v341, 7
    %v343 = vsub.s32 7, %v342
    %v344 = vrot.slane %v90, %v343
    %vm345 = vcmp.eq.s32.totalorder %v242, %v316
    %vm346 = vcmp.eq.s32.totalorder %v252, %v320
    %vm347 = vcmp.eq.s32.totalorder %v262, %v324
    %vm348 = vcmp.eq.s32.totalorder %v272, %v328
    %vm349 = vcmp.eq.s32.totalorder %v282, %v332
    %vm350 = vcmp.eq.s32.totalorder %v292, %v336
    %vm351 = vcmp.eq.s32.totalorder %v302, %v340
    %vm352 = vcmp.eq.s32.totalorder %v312, %v344
    %v353 = vsel %vm345, 1, 0
    %v354 = vsel %vm346, 1, 0
    %v355 = vsel %vm347, 1, 0
    %v356 = vsel %vm348, 1, 0
    %v357 = vsel %vm349, 1, 0
    %v358 = vsel %vm350, 1, 0
    %v359 = vsel %vm351, 1, 0
    %v360 = vsel %vm352, 1, 0
    %v361 = vcvt.s32.f32 %v353
    %v362 = vcvt.s32.f32 %v354
    %v363 = vcvt.s32.f32 %v355
    %v364 = vcvt.s32.f32 %v356
    %v365 = vcvt.s32.f32 %v357
    %v366 = vcvt.s32.f32 %v358
    %v367 = vcvt.s32.f32 %v359
    %v368 = vcvt.s32.f32 %v360
    %v369 = vld [vmem:[%s0] sm:$0xff]
    %v370 = vld [vmem:[%s0 + $0x8] sm:$0x7f]
    %v371 = vld [vmem:[%s1] sm:$0xff]
    %v372 = vld [vmem:[%s1 + $0x8] sm:$0x7f]
    %374 = vset.pattern.permute.xlu0 0
    %375 = vperm.xlu0 %374, %v369
    %v376 = vpop.permute.xlu0 %375
    %379 = vset.pattern.permute.xlu0 0
    %380 = vperm.xlu0 %379, %v370
    %v381 = vpop.permute.xlu0 %380
    %vm383 = vcmp.gt.f32.partialorder %v188, %v376
    %vm384 = vcmp.gt.f32.partialorder %v189, %v376
    %vm385 = vcmp.gt.f32.partialorder %v190, %v376
    %vm386 = vcmp.gt.f32.partialorder %v191, %v376
    %vm387 = vcmp.gt.f32.partialorder %v192, %v376
    %vm388 = vcmp.gt.f32.partialorder %v193, %v376
    %vm389 = vcmp.gt.f32.partialorder %v194, %v376
    %vm390 = vcmp.gt.f32.partialorder %v195, %v376
    %vm391 = vcmp.gt.f32.partialorder %v188, %v381
    %vm392 = vcmp.gt.f32.partialorder %v189, %v381
    %vm393 = vcmp.gt.f32.partialorder %v190, %v381
    %vm394 = vcmp.gt.f32.partialorder %v191, %v381
    %vm395 = vcmp.gt.f32.partialorder %v192, %v381
    %vm396 = vcmp.gt.f32.partialorder %v193, %v381
    %vm397 = vcmp.gt.f32.partialorder %v194, %v381
    %vm398 = vcmp.gt.f32.partialorder %v195, %v381
    %400 = vset.pattern.permute.xlu0 0
    %401 = vperm.xlu0 %400, %v371
    %v402 = vpop.permute.xlu0 %401
    %405 = vset.pattern.permute.xlu0 0
    %406 = vperm.xlu0 %405, %v372
    %v407 = vpop.permute.xlu0 %406
    %vm409 = vcmp.lt.f32.partialorder %v188, %v402
    %vm410 = vcmp.lt.f32.partialorder %v189, %v402
    %vm411 = vcmp.lt.f32.partialorder %v190, %v402
    %vm412 = vcmp.lt.f32.partialorder %v191, %v402
    %vm413 = vcmp.lt.f32.partialorder %v192, %v402
    %vm414 = vcmp.lt.f32.partialorder %v193, %v402
    %vm415 = vcmp.lt.f32.partialorder %v194, %v402
    %vm416 = vcmp.lt.f32.partialorder %v195, %v402
    %vm417 = vcmp.lt.f32.partialorder %v188, %v407
    %vm418 = vcmp.lt.f32.partialorder %v189, %v407
    %vm419 = vcmp.lt.f32.partialorder %v190, %v407
    %vm420 = vcmp.lt.f32.partialorder %v191, %v407
    %vm421 = vcmp.lt.f32.partialorder %v192, %v407
    %vm422 = vcmp.lt.f32.partialorder %v193, %v407
    %vm423 = vcmp.lt.f32.partialorder %v194, %v407
    %vm424 = vcmp.lt.f32.partialorder %v195, %v407
    %vm425 = vmand %vm383, %vm409
    %vm426 = vmand %vm384, %vm410
    %vm427 = vmand %vm385, %vm411
    %vm428 = vmand %vm386, %vm412
    %vm429 = vmand %vm387, %vm413
    %vm430 = vmand %vm388, %vm414
    %vm431 = vmand %vm389, %vm415
    %vm432 = vmand %vm390, %vm416
    %vm433 = vmand %vm391, %vm417
    %vm434 = vmand %vm392, %vm418
    %vm435 = vmand %vm393, %vm419
    %vm436 = vmand %vm394, %vm420
    %vm437 = vmand %vm395, %vm421
    %vm438 = vmand %vm396, %vm422
    %vm439 = vmand %vm397, %vm423
    %vm440 = vmand %vm398, %vm424
    %v441 = vsel %vm425, 1, 0
    %v442 = vsel %vm426, 1, 0
    %v443 = vsel %vm427, 1, 0
    %v444 = vsel %vm428, 1, 0
    %v445 = vsel %vm429, 1, 0
    %v446 = vsel %vm430, 1, 0
    %v447 = vsel %vm431, 1, 0
    %v448 = vsel %vm432, 1, 0
    %v449 = vsel %vm433, 1, 0
    %v450 = vsel %vm434, 1, 0
    %v451 = vsel %vm435, 1, 0
    %v452 = vsel %vm436, 1, 0
    %v453 = vsel %vm437, 1, 0
    %v454 = vsel %vm438, 1, 0
    %v455 = vsel %vm439, 1, 0
    %v456 = vsel %vm440, 1, 0
    %v457 = vcvt.s32.f32 %v441
    %v458 = vcvt.s32.f32 %v442
    %v459 = vcvt.s32.f32 %v443
    %v460 = vcvt.s32.f32 %v444
    %v461 = vcvt.s32.f32 %v445
    %v462 = vcvt.s32.f32 %v446
    %v463 = vcvt.s32.f32 %v447
    %v464 = vcvt.s32.f32 %v448
    %v465 = vcvt.s32.f32 %v449
    %v466 = vcvt.s32.f32 %v450
    %v467 = vcvt.s32.f32 %v451
    %v468 = vcvt.s32.f32 %v452
    %v469 = vcvt.s32.f32 %v453
    %v470 = vcvt.s32.f32 %v454
    %v471 = vcvt.s32.f32 %v455
    %v472 = vcvt.s32.f32 %v456
    %v473 = vld [vmem:[%s4] sm:$0xff]
    %v474 = vld [vmem:[%s4 + $0x8] sm:$0x7f]
    %v475 = vadd.f32 %v457, %v458
    %v476 = vadd.f32 %v475, %v459
    %v477 = vadd.f32 %v476, %v460
    %v478 = vadd.f32 %v477, %v461
    %v479 = vadd.f32 %v478, %v462
    %v480 = vadd.f32 %v479, %v463
    %v481 = vadd.f32 %v480, %v464
    %482 = vadd.xlane.f32.xlu0 %v481
    %v483 = vpop.xlane.xlu0 %482
    %vm484 = vcmask 1046528
    %v485 = vsel %vm484, %v465, 0.0
    %v486 = vsel %vm484, %v466, 0.0
    %v487 = vadd.f32 %v485, %v486
    %v488 = vsel %vm484, %v467, 0.0
    %v489 = vadd.f32 %v487, %v488
    %v490 = vsel %vm484, %v468, 0.0
    %v491 = vadd.f32 %v489, %v490
    %v492 = vsel %vm484, %v469, 0.0
    %v493 = vadd.f32 %v491, %v492
    %v494 = vsel %vm484, %v470, 0.0
    %v495 = vadd.f32 %v493, %v494
    %v496 = vsel %vm484, %v471, 0.0
    %v497 = vadd.f32 %v495, %v496
    %v498 = vsel %vm484, %v472, 0.0
    %v499 = vadd.f32 %v497, %v498
    %500 = vadd.xlane.f32.xlu0 %v499
    %v501 = vpop.xlane.xlu0 %500
    %v502 = vadd.f32 %v473, %v483
    %v503 = vadd.f32 %v474, %v501
    %vm504 = vcmask 7168
    %505 = vst.msk [vmem:[%s4] sm:$0xff] %vm504, %v502
    %vm506 = vcmask 6144
    %507 = vst.msk [vmem:[%s4 + $0x8] sm:$0x7f] %vm506, %v503
    %v508 = vld [vmem:[%s5] sm:$0xff]
    %v509 = vld [vmem:[%s5 + $0x8] sm:$0x7f]
    %v510 = vmul.f32 %v457, %v188
    %v511 = vmul.f32 %v458, %v189
    %v512 = vmul.f32 %v459, %v190
    %v513 = vmul.f32 %v460, %v191
    %v514 = vmul.f32 %v461, %v192
    %v515 = vmul.f32 %v462, %v193
    %v516 = vmul.f32 %v463, %v194
    %v517 = vmul.f32 %v464, %v195
    %v518 = vmul.f32 %v465, %v188
    %v519 = vmul.f32 %v466, %v189
    %v520 = vmul.f32 %v467, %v190
    %v521 = vmul.f32 %v468, %v191
    %v522 = vmul.f32 %v469, %v192
    %v523 = vmul.f32 %v470, %v193
    %v524 = vmul.f32 %v471, %v194
    %v525 = vmul.f32 %v472, %v195
    %v526 = vadd.f32 %v510, %v511
    %v527 = vadd.f32 %v526, %v512
    %v528 = vadd.f32 %v527, %v513
    %v529 = vadd.f32 %v528, %v514
    %v530 = vadd.f32 %v529, %v515
    %v531 = vadd.f32 %v530, %v516
    %v532 = vadd.f32 %v531, %v517
    %533 = vadd.xlane.f32.xlu0 %v532
    %v534 = vpop.xlane.xlu0 %533
    %v535 = vsel %vm484, %v518, 0.0
    %v536 = vsel %vm484, %v519, 0.0
    %v537 = vadd.f32 %v535, %v536
    %v538 = vsel %vm484, %v520, 0.0
    %v539 = vadd.f32 %v537, %v538
    %v540 = vsel %vm484, %v521, 0.0
    %v541 = vadd.f32 %v539, %v540
    %v542 = vsel %vm484, %v522, 0.0
    %v543 = vadd.f32 %v541, %v542
    %v544 = vsel %vm484, %v523, 0.0
    %v545 = vadd.f32 %v543, %v544
    %v546 = vsel %vm484, %v524, 0.0
    %v547 = vadd.f32 %v545, %v546
    %v548 = vsel %vm484, %v525, 0.0
    %v549 = vadd.f32 %v547, %v548
    %550 = vadd.xlane.f32.xlu0 %v549
    %v551 = vpop.xlane.xlu0 %550
    %v552 = vadd.f32 %v508, %v534
    %v553 = vadd.f32 %v509, %v551
    %554 = vst.msk [vmem:[%s5] sm:$0xff] %vm504, %v552
    %555 = vst.msk [vmem:[%s5 + $0x8] sm:$0x7f] %vm506, %v553
    %v556 = vld [vmem:[%s6] sm:$0xff]
    %v557 = vld [vmem:[%s6 + $0x8] sm:$0x7f]
    %v558 = vlaneseq
    %v559 = vshrl.u32 %v558, 7
    %v560 = vsub.s32 0, %v559
    %v561 = vrot.slane %v361, %v560
    %v562 = vlaneseq
    %v563 = vshrl.u32 %v562, 7
    %v564 = vsub.s32 0, %v563
    %v565 = vrot.slane %v362, %v564
    %v566 = vlaneseq
    %v567 = vshrl.u32 %v566, 7
    %v568 = vsub.s32 0, %v567
    %v569 = vrot.slane %v363, %v568
    %v570 = vlaneseq
    %v571 = vshrl.u32 %v570, 7
    %v572 = vsub.s32 0, %v571
    %v573 = vrot.slane %v364, %v572
    %v574 = vlaneseq
    %v575 = vshrl.u32 %v574, 7
    %v576 = vsub.s32 0, %v575
    %v577 = vrot.slane %v365, %v576
    %v578 = vlaneseq
    %v579 = vshrl.u32 %v578, 7
    %v580 = vsub.s32 0, %v579
    %v581 = vrot.slane %v366, %v580
    %v582 = vlaneseq
    %v583 = vshrl.u32 %v582, 7
    %v584 = vsub.s32 0, %v583
    %v585 = vrot.slane %v367, %v584
    %v586 = vlaneseq
    %v587 = vshrl.u32 %v586, 7
    %v588 = vsub.s32 0, %v587
    %v589 = vrot.slane %v368, %v588
    %v590 = vmul.f32 %v457, %v561
    %v591 = vmul.f32 %v458, %v565
    %v592 = vmul.f32 %v459, %v569
    %v593 = vmul.f32 %v460, %v573
    %v594 = vmul.f32 %v461, %v577
    %v595 = vmul.f32 %v462, %v581
    %v596 = vmul.f32 %v463, %v585
    %v597 = vmul.f32 %v464, %v589
    %v598 = vmul.f32 %v465, %v561
    %v599 = vmul.f32 %v466, %v565
    %v600 = vmul.f32 %v467, %v569
    %v601 = vmul.f32 %v468, %v573
    %v602 = vmul.f32 %v469, %v577
    %v603 = vmul.f32 %v470, %v581
    %v604 = vmul.f32 %v471, %v585
    %v605 = vmul.f32 %v472, %v589
    %v606 = vadd.f32 %v590, %v591
    %v607 = vadd.f32 %v606, %v592
    %v608 = vadd.f32 %v607, %v593
    %v609 = vadd.f32 %v608, %v594
    %v610 = vadd.f32 %v609, %v595
    %v611 = vadd.f32 %v610, %v596
    %v612 = vadd.f32 %v611, %v597
    %613 = vadd.xlane.f32.xlu0 %v612
    %v614 = vpop.xlane.xlu0 %613
    %v615 = vsel %vm484, %v598, 0.0
    %v616 = vsel %vm484, %v599, 0.0
    %v617 = vadd.f32 %v615, %v616
    %v618 = vsel %vm484, %v600, 0.0
    %v619 = vadd.f32 %v617, %v618
    %v620 = vsel %vm484, %v601, 0.0
    %v621 = vadd.f32 %v619, %v620
    %v622 = vsel %vm484, %v602, 0.0
    %v623 = vadd.f32 %v621, %v622
    %v624 = vsel %vm484, %v603, 0.0
    %v625 = vadd.f32 %v623, %v624
    %v626 = vsel %vm484, %v604, 0.0
    %v627 = vadd.f32 %v625, %v626
    %v628 = vsel %vm484, %v605, 0.0
    %v629 = vadd.f32 %v627, %v628
    %630 = vadd.xlane.f32.xlu0 %v629
    %v631 = vpop.xlane.xlu0 %630
    %v632 = vadd.f32 %v556, %v614
    %v633 = vadd.f32 %v557, %v631
    %634 = vst.msk [vmem:[%s6] sm:$0xff] %vm504, %v632
    %635 = vst.msk [vmem:[%s6 + $0x8] sm:$0x7f] %vm506, %v633
    // Predicated region
    $region26: #{tpu_custom_call.1} parent=1 // pred_check
      _
    $region27: #{tpu_custom_call.1} parent=1 // pred_check_branch
      %637 = sbr.rel (0) target = $region29
    $region28: #{tpu_custom_call.1} parent=1 // pred_region
      _
    $region29: #{tpu_custom_call.1} parent=1 // pred_fallthru
      _
    // Predicated region
    $region30: #{tpu_custom_call.1} parent=1 // pred_check
      _
    $region31: #{tpu_custom_call.1} parent=1 // pred_check_branch
      %639 = sbr.rel (0) target = $region33
    $region32: #{tpu_custom_call.1} parent=1 // pred_region
      _
    $region33: #{tpu_custom_call.1} parent=1 // pred_fallthru
      _
    // Predicated region
    $region34: #{tpu_custom_call.1} parent=1 // pred_check
      _
    $region35: #{tpu_custom_call.1} parent=1 // pred_check_branch
      %641 = sbr.rel (0) target = $region37
    $region36: #{tpu_custom_call.1} parent=1 // pred_region
      _
    $region37: #{tpu_custom_call.1} parent=1 // pred_fallthru
      _
    // Predicated region
    $region38: #{tpu_custom_call.1} parent=1 // pred_check
      _
    $region39: #{tpu_custom_call.1} parent=1 // pred_check_branch
      %643 = sbr.rel (0) target = $region41
    $region40: #{tpu_custom_call.1} parent=1 // pred_region
      _
    $region41: #{tpu_custom_call.1} parent=1 // pred_fallthru
      _
    // Predicated region
    $region42: #{tpu_custom_call.1} parent=1 // pred_check
      _
    $region43: #{tpu_custom_call.1} parent=1 // pred_check_branch
      %645 = sbr.rel (0) target = $region45
    $region44: #{tpu_custom_call.1} parent=1 // pred_region
      _
    $region45: #{tpu_custom_call.1} parent=1 // pred_fallthru
      _
    // Predicated region
    $region46: #{tpu_custom_call.1} parent=1 // pred_check
      _
    $region47: #{tpu_custom_call.1} parent=1 // pred_check_branch
      %647 = sbr.rel (0) target = $region49
    $region48: #{tpu_custom_call.1} parent=1 // pred_region
      _
    $region49: #{tpu_custom_call.1} parent=1 // pred_fallthru
      _
    %648 = vsyncpa [#allocation3], 1

</llo_original>
